<compile_context>
chip_gen: v7x
topology: tpu7x:2x2x1
jax: 0.10.0
libtpu: 0.0.40
codegen_flags: <defaults>
</compile_context>

<pallas_src>
import jax
import jax.numpy as jnp
import numpy as np
from jax.experimental import pallas as pl
from jax.experimental.pallas import tpu as pltpu

LANE = 128
TB_CAP = 256          # max batch lanes per grid step (vreg/VMEM pressure cap)


def _round_up(x, m):
    return ((x + m - 1) // m) * m


def _num_tensorcores():
    """TensorCores per chip that can pick up 'parallel' grid steps."""
    try:
        kind = jax.devices()[0].device_kind.lower()
    except Exception:
        return 1
    # v7x has 2 TensorCores per chip; v5e / v6e have 1.
    return 2 if ("v7" in kind or "7x" in kind) else 1


def _critic_kernel(x_ref, w1_ref, b1_ref, w2_ref, b2_ref, w3_ref, b3_ref,
                   o_ref):
    """One batch tile (transposed layout, batch in lanes):
         x_ref  [K,  TB] bf16   w1_ref [H1, K ] bf16   b1_ref [H1, 1] f32
         w2_ref [H2, H1] bf16   b2_ref [H2, 1] f32
         w3_ref [H2, 1 ] f32    b3_ref [1,  1 ] f32 (SMEM scalar)
         o_ref  [1,  TB] f32
    """
    # fc1 (state||action already merged into x): single MXU dot, f32 accumulate.
    h1 = jnp.dot(w1_ref[...], x_ref[...], preferred_element_type=jnp.float32)
    h1 = jnp.maximum(h1 + b1_ref[...], 0.0)
    # fc2 (bf16 operands, f32 accumulate)
    h2 = jnp.dot(w2_ref[...], h1.astype(w2_ref.dtype),
                 preferred_element_type=jnp.float32)
    h2 = jnp.maximum(h2 + b2_ref[...], 0.0)
    # q head (out_features == 1): f32 VPU multiply + sublane (XLU) reduce.
    # Result is already a lane-dense [1, TB] row -> unmasked store.
    q = jnp.sum(h2 * w3_ref[...], axis=0, keepdims=True)
    o_ref[...] = q + b3_ref[0, 0]


def init_params(key, input_dims, n_actions, fc1_dims, fc2_dims):
    """Mirrors nn.Linear's U(-1/sqrt(fan_in), 1/sqrt(fan_in)) init.
    Weights are stored [in, out] (transposed vs. PyTorch's [out, in])."""
    in1 = input_dims + n_actions
    k = jax.random.split(key, 6)

    def uinit(kk, shape, fan_in):
        bound = 1.0 / np.sqrt(fan_in)
        return jax.random.uniform(kk, shape, jnp.float32, -bound, bound)

    w1 = uinit(k[0], (in1, fc1_dims), in1)
    b1 = uinit(k[1], (1, fc1_dims), in1)
    w2 = uinit(k[2], (fc1_dims, fc2_dims), fc1_dims)
    b2 = uinit(k[3], (1, fc2_dims), fc1_dims)
    w3 = uinit(k[4], (fc2_dims, 1), fc2_dims)
    b3 = uinit(k[5], (1, 1), fc2_dims)
    return (w1, b1, w2, b2, w3, b3)


def pack_params(params, input_dims, n_actions, *, use_bf16=True):
    """One-time prep: transpose weights to [out, in], merge the concat dim
    (K = input_dims + n_actions padded to 16), zero-pad hidden dims to a
    lane-dense multiple of 128, cast matmul operands to bf16."""
    w1, b1, w2, b2, w3, b3 = params
    in1 = w1.shape[0]
    fc1, fc2 = w1.shape[1], w2.shape[1]
    assert in1 == input_dims + n_actions
    k_pad = _round_up(in1, 16)            # bf16 sublane pack for the K dim
    h1p, h2p = _round_up(fc1, LANE), _round_up(fc2, LANE)
    cdt = jnp.bfloat16 if use_bf16 else jnp.float32

    w1t = jnp.zeros((h1p, k_pad), jnp.float32).at[:fc1, :in1].set(w1.T)
    b1c = jnp.zeros((h1p, 1), jnp.float32).at[:fc1, 0].set(b1[0])
    w2t = jnp.zeros((h2p, h1p), jnp.float32).at[:fc2, :fc1].set(w2.T)
    b2c = jnp.zeros((h2p, 1), jnp.float32).at[:fc2, 0].set(b2[0])
    w3c = jnp.zeros((h2p, 1), jnp.float32).at[:fc2, 0].set(w3[:, 0])
    b3s = jnp.reshape(b3, (1, 1)).astype(jnp.float32)

    # biases / q-head column stay f32 (added to / multiplied with f32 values)
    return (w1t.astype(cdt), b1c, w2t.astype(cdt), b2c, w3c, b3s)


def critic_forward(state, action, packed, *, num_cores=None):
    """state: [B, input_dims], action: [B, n_actions] -> q: [B, 1] (f32)."""
    w1t, b1c, w2t, b2c, w3c, b3s = packed
    B, in_s = state.shape
    n_a = action.shape[1]
    h1p, k_pad = w1t.shape
    h2p = w2t.shape[0]
    cdt = w1t.dtype

    if num_cores is None:
        num_cores = _num_tensorcores()

    # Batch lives in the lane dim -> tiles are multiples of 128.
    # Single-TC chips: as few grid steps as possible (per-step fixed cost
    # ~0.35us dominates this kernel). v7x: balanced halves so both TCs work.
    per_core = -(-B // num_cores)
    tb = min(TB_CAP, _round_up(per_core, LANE))
    b_pad = _round_up(B, tb)
    num_tiles = b_pad // tb

    # Merge + pad + transpose state||action into one [K, B_pad] bf16 slab.
    # Padded lanes (zero state/action) still yield nonzero q via the biases;
    # they are sliced off below and must not be read downstream.
    xt = jnp.zeros((k_pad, b_pad), cdt)
    xt = xt.at[:in_s, :B].set(state.T.astype(cdt))
    xt = xt.at[in_s:in_s + n_a, :B].set(action.T.astype(cdt))

    const_map = lambda i: (0, 0)   # weights/biases stay resident across steps
    batch_map = lambda i: (0, i)

    flops = 2 * b_pad * (k_pad * h1p + h1p * h2p + h2p)
    bytes_accessed = int(
        sum(int(np.prod(x.shape)) * x.dtype.itemsize
            for x in (xt, w1t, b1c, w2t, b2c, w3c, b3s)) + b_pad * 4)

    out = pl.pallas_call(
        _critic_kernel,
        out_shape=jax.ShapeDtypeStruct((1, b_pad), jnp.float32),
        grid=(num_tiles,),
        in_specs=[
            pl.BlockSpec((k_pad, tb), batch_map),               # x (pipelined)
            pl.BlockSpec(w1t.shape, const_map),
            pl.BlockSpec(b1c.shape, const_map),
            pl.BlockSpec(w2t.shape, const_map),
            pl.BlockSpec(b2c.shape, const_map),
            pl.BlockSpec(w3c.shape, const_map),
            pl.BlockSpec(memory_space=pltpu.MemorySpace.SMEM),  # q1 bias scalar
        ],
        out_specs=pl.BlockSpec((1, tb), batch_map),             # lane-dense row
        compiler_params=pltpu.CompilerParams(
            dimension_semantics=("parallel",)),
        cost_estimate=pl.CostEstimate(
            flops=flops, transcendentals=0, bytes_accessed=bytes_accessed),
    )(xt, w1t, b1c, w2t, b2c, w3c, b3s)

    return out[0, :B][:, None]


def reference_forward(state, action, params, *, use_bf16=True):
    """Pure-JAX reference with the same dtype policy (bf16 ops, f32 acc)."""
    w1, b1, w2, b2, w3, b3 = params
    cdt = jnp.bfloat16 if use_bf16 else jnp.float32
    x = jnp.concatenate([state, action], axis=1).astype(cdt)
    h1 = jnp.maximum(
        jnp.dot(x, w1.astype(cdt), preferred_element_type=jnp.float32) + b1, 0.0)
    h2 = jnp.maximum(
        jnp.dot(h1.astype(cdt), w2.astype(cdt),
                preferred_element_type=jnp.float32) + b2, 0.0)
    return jnp.dot(h2, w3, preferred_element_type=jnp.float32) + b3


if __name__ == "__main__":
    # Small shapes consistent with the module:
    #   input_dims = (16,), n_actions = 4, fc1_dims = 32, fc2_dims = 32, batch = 2
    B, INPUT_DIMS, N_ACTIONS, FC1, FC2 = 2, 16, 4, 32, 32
    # TODO(synk): optimizer (Adam), checkpoint save/load and device moves are
    # training/IO machinery, not part of the forward pass; not translated.

    key = jax.random.PRNGKey(0)
    kp, ks, ka = jax.random.split(key, 3)

    params = init_params(kp, INPUT_DIMS, N_ACTIONS, FC1, FC2)
    packed = pack_params(params, INPUT_DIMS, N_ACTIONS, use_bf16=True)

    fwd = jax.jit(lambda s, a: critic_forward(s, a, packed))

    state = jax.random.normal(ks, (B, INPUT_DIMS), jnp.float32)
    action = jax.random.normal(ka, (B, N_ACTIONS), jnp.float32)

    q = fwd(state, action)
    jax.block_until_ready(q)
    q_ref = reference_forward(state, action, params)
    np.testing.assert_allclose(np.asarray(q), np.asarray(q_ref),
                               rtol=1e-4, atol=1e-4)
    assert q.shape == (B, 1)

    # Exercise the batch grid (multiple lane tiles + padding) at a TD3-like batch.
    B2 = 300
    s2 = jax.random.normal(jax.random.PRNGKey(1), (B2, INPUT_DIMS), jnp.float32)
    a2 = jax.random.normal(jax.random.PRNGKey(2), (B2, N_ACTIONS), jnp.float32)
    q2 = fwd(s2, a2)
    jax.block_until_ready(q2)
    q2_ref = reference_forward(s2, a2, params)
    np.testing.assert_allclose(np.asarray(q2), np.asarray(q2_ref),
                               rtol=1e-4, atol=1e-4)
    assert q2.shape == (B2, 1)

    print("KERNEL_OK")
</pallas_src>

<mosaic_0001>
module attributes {stable_mosaic.version = 11 : i64} {
  func.func @_critic_kernel(%arg0: i32, %arg1: memref<32x128xbf16, #tpu.memory_space<vmem>>, %arg2: memref<128x32xbf16, #tpu.memory_space<vmem>>, %arg3: memref<128x1xf32, #tpu.memory_space<vmem>>, %arg4: memref<128x128xbf16, #tpu.memory_space<vmem>>, %arg5: memref<128x1xf32, #tpu.memory_space<vmem>>, %arg6: memref<128x1xf32, #tpu.memory_space<vmem>>, %arg7: memref<1x1xf32, #tpu.memory_space<smem>>, %arg8: memref<1x128xf32, #tpu.memory_space<vmem>>) attributes {dimension_semantics = [#tpu.dimension_semantics<parallel>], iteration_bounds = array<i64: 1>, scalar_prefetch = 0 : i64, scratch_operands = 0 : i64, tpu.core_type = #tpu.core_type<tc>, window_params = [{transform_indices = @transform_0, window_bounds = array<i64: 32, 128>}, {pipeline_mode = #tpu.pipeline_mode<synchronous>, transform_indices = @transform_1, window_bounds = array<i64: 128, 32>}, {pipeline_mode = #tpu.pipeline_mode<synchronous>, transform_indices = @transform_2, window_bounds = array<i64: 128, 1>}, {pipeline_mode = #tpu.pipeline_mode<synchronous>, transform_indices = @transform_3, window_bounds = array<i64: 128, 128>}, {pipeline_mode = #tpu.pipeline_mode<synchronous>, transform_indices = @transform_4, window_bounds = array<i64: 128, 1>}, {pipeline_mode = #tpu.pipeline_mode<synchronous>, transform_indices = @transform_5, window_bounds = array<i64: 128, 1>}, {transform_indices = @transform_6, window_bounds = array<i64: 1, 1>}, {transform_indices = @transform_7, window_bounds = array<i64: 1, 128>}]} {
    %c0 = arith.constant 0 : index
    %c0_0 = arith.constant 0 : index
    %0 = vector.load %arg2[%c0, %c0_0] : memref<128x32xbf16, #tpu.memory_space<vmem>>, vector<128x32xbf16>
    %c0_1 = arith.constant 0 : index
    %c0_2 = arith.constant 0 : index
    %1 = vector.load %arg1[%c0_1, %c0_2] : memref<32x128xbf16, #tpu.memory_space<vmem>>, vector<32x128xbf16>
    %cst = arith.constant dense<0.000000e+00> : vector<128x128xf32>
    %2 = tpu.matmul %0, %1, %cst {dimension_numbers = #tpu.dot_dimension_numbers<[1], [0], [0], [1], [0, 0, 1, 1], [], []>} : vector<128x32xbf16>, vector<32x128xbf16>, vector<128x128xf32> -> vector<128x128xf32>
    %c0_3 = arith.constant 0 : index
    %c0_4 = arith.constant 0 : index
    %3 = vector.load %arg3[%c0_3, %c0_4] : memref<128x1xf32, #tpu.memory_space<vmem>>, vector<128x1xf32>
    %4 = vector.broadcast %3 : vector<128x1xf32> to vector<128x128xf32>
    %5 = arith.addf %2, %4 : vector<128x128xf32>
    %cst_5 = arith.constant 0.000000e+00 : f32
    %6 = vector.broadcast %cst_5 : f32 to vector<128x128xf32>
    %7 = arith.maximumf %5, %6 : vector<128x128xf32>
    %c0_6 = arith.constant 0 : index
    %c0_7 = arith.constant 0 : index
    %8 = vector.load %arg4[%c0_6, %c0_7] : memref<128x128xbf16, #tpu.memory_space<vmem>>, vector<128x128xbf16>
    %9 = arith.truncf %7 : vector<128x128xf32> to vector<128x128xbf16>
    %cst_8 = arith.constant dense<0.000000e+00> : vector<128x128xf32>
    %10 = tpu.matmul %8, %9, %cst_8 {dimension_numbers = #tpu.dot_dimension_numbers<[1], [0], [0], [1], [0, 0, 1, 1], [], []>} : vector<128x128xbf16>, vector<128x128xbf16>, vector<128x128xf32> -> vector<128x128xf32>
    %c0_9 = arith.constant 0 : index
    %c0_10 = arith.constant 0 : index
    %11 = vector.load %arg5[%c0_9, %c0_10] : memref<128x1xf32, #tpu.memory_space<vmem>>, vector<128x1xf32>
    %12 = vector.broadcast %11 : vector<128x1xf32> to vector<128x128xf32>
    %13 = arith.addf %10, %12 : vector<128x128xf32>
    %cst_11 = arith.constant 0.000000e+00 : f32
    %14 = vector.broadcast %cst_11 : f32 to vector<128x128xf32>
    %15 = arith.maximumf %13, %14 : vector<128x128xf32>
    %c0_12 = arith.constant 0 : index
    %c0_13 = arith.constant 0 : index
    %16 = vector.load %arg6[%c0_12, %c0_13] : memref<128x1xf32, #tpu.memory_space<vmem>>, vector<128x1xf32>
    %17 = vector.broadcast %16 : vector<128x1xf32> to vector<128x128xf32>
    %18 = arith.mulf %15, %17 : vector<128x128xf32>
    %cst_14 = arith.constant dense<0.000000e+00> : vector<128xf32>
    %19 = vector.multi_reduction <add>, %18, %cst_14 [0] : vector<128x128xf32> to vector<128xf32>
    %20 = vector.shape_cast %19 : vector<128xf32> to vector<1x128xf32>
    %c0_15 = arith.constant 0 : index
    %c0_16 = arith.constant 0 : index
    %21 = memref.load %arg7[%c0_15, %c0_16] : memref<1x1xf32, #tpu.memory_space<smem>>
    %22 = vector.broadcast %21 : f32 to vector<1x128xf32>
    %23 = arith.addf %20, %22 : vector<1x128xf32>
    %c0_17 = arith.constant 0 : index
    %c0_18 = arith.constant 0 : index
    %24 = vector.load %arg8[%c0_17, %c0_18] : memref<1x128xf32, #tpu.memory_space<vmem>>, vector<1x128xf32>
    tpu.vector_store %arg8[%c0_17, %c0_18], %23 {strides = array<i32>} : memref<1x128xf32, #tpu.memory_space<vmem>>, vector<1x128xf32>,
    return
  }
  func.func @transform_0(%arg0: i32) -> (i32, i32) {
    %c0_i32 = arith.constant 0 : i32
    %c0_i32_0 = arith.constant 0 : i32
    return %c0_i32, %arg0 : i32, i32
  }
  func.func @transform_1(%arg0: i32) -> (i32, i32) {
    %c0_i32 = arith.constant 0 : i32
    %c0_i32_0 = arith.constant 0 : i32
    %c0_i32_1 = arith.constant 0 : i32
    return %c0_i32, %c0_i32_0 : i32, i32
  }
  func.func @transform_2(%arg0: i32) -> (i32, i32) {
    %c0_i32 = arith.constant 0 : i32
    %c0_i32_0 = arith.constant 0 : i32
    %c0_i32_1 = arith.constant 0 : i32
    return %c0_i32, %c0_i32_0 : i32, i32
  }
  func.func @transform_3(%arg0: i32) -> (i32, i32) {
    %c0_i32 = arith.constant 0 : i32
    %c0_i32_0 = arith.constant 0 : i32
    %c0_i32_1 = arith.constant 0 : i32
    return %c0_i32, %c0_i32_0 : i32, i32
  }
  func.func @transform_4(%arg0: i32) -> (i32, i32) {
    %c0_i32 = arith.constant 0 : i32
    %c0_i32_0 = arith.constant 0 : i32
    %c0_i32_1 = arith.constant 0 : i32
    return %c0_i32, %c0_i32_0 : i32, i32
  }
  func.func @transform_5(%arg0: i32) -> (i32, i32) {
    %c0_i32 = arith.constant 0 : i32
    %c0_i32_0 = arith.constant 0 : i32
    %c0_i32_1 = arith.constant 0 : i32
    return %c0_i32, %c0_i32_0 : i32, i32
  }
  func.func @transform_6(%arg0: i32) -> (i32, i32) {
    %c0_i32 = arith.constant 0 : i32
    %c0_i32_0 = arith.constant 0 : i32
    %c0_i32_1 = arith.constant 0 : i32
    return %c0_i32, %c0_i32_0 : i32, i32
  }
  func.func @transform_7(%arg0: i32) -> (i32, i32) {
    %c0_i32 = arith.constant 0 : i32
    %c0_i32_0 = arith.constant 0 : i32
    return %c0_i32, %arg0 : i32, i32
  }
}

</mosaic_0001>

<llo_original>
// kernel: _lambda_.1
$region0: #{_lambda_.1}
  #allocation0 [shape = 'u32[]', space=smem, size = 0x4, offset = 0x4, fixed_abs, tag = 'smem constant byte address 0x4 - core index']
  #allocation1 [shape = 'u32[144,128]{1,0:T(1,128)}', space=vmem, size = 0x12000, scoped, tag = 'internal scratch']
  #allocation2 [shape = 'f32[1,1]{1,0:T(1,128)S(6)}', space=smem, size = 0x200, scoped, tag = 'scoped memory for _lambda_.1']
  %s0 = inlined_call_operand.vmem [shape: bf16[32,128], index: 0, kind: input, shape index: {}]
  %s1 = inlined_call_operand.hbm [shape: bf16[128,32], index: 1, kind: input, shape index: {}]
  %s2 = inlined_call_operand.hbm [shape: f32[128,1], index: 2, kind: input, shape index: {}]
  %s3 = inlined_call_operand.vmem [shape: bf16[128,128], index: 3, kind: input, shape index: {}]
  %s4 = inlined_call_operand.hbm [shape: f32[128,1], index: 4, kind: input, shape index: {}]
  %s5 = inlined_call_operand.hbm [shape: f32[128,1], index: 5, kind: input, shape index: {}]
  %s6 = inlined_call_operand.<no memory space> [shape: f32[1,1], index: 6, kind: input, shape index: {}]
  %s7 = inlined_call_operand.vmem [shape: f32[1,128], index: 7, kind: output, shape index: {}]
  %s8 = sld [smem:[#allocation0]]
  $region54: #{_lambda_.1} parent=0
    _
  %s10 = ssub.s32 1, %s8
  %s11 = scalar_select 0, %s10, %s8
  %12 = sst [smem:[#allocation2]] %s6
  $region1: #{_lambda_.1} parent=0
    #allocation3 [shape = 'u8[32768]{0}', space=vmem, size = 0x8000, scoped, tag = 'input window, operand 1, single buffered']
    #allocation4 [shape = 's32[1]{0}', space=sflag, size = 0x4, scoped, tag = 'scoped memory for _lambda_.1']
    #allocation5 [shape = 'u8[65536]{0}', space=vmem, size = 0x10000, scoped, tag = 'input window, operand 2, single buffered']
    #allocation6 [shape = 's32[1]{0}', space=sflag, size = 0x4, scoped, tag = 'scoped memory for _lambda_.1']
    #allocation7 [shape = 'u8[65536]{0}', space=vmem, size = 0x10000, scoped, tag = 'input window, operand 4, single buffered']
    #allocation8 [shape = 'u8[65536]{0}', space=vmem, size = 0x10000, scoped, tag = 'input window, operand 5, single buffered']
    #allocation9 [shape = 's32[1]{0}', space=sflag, size = 0x4, scoped, tag = 'scoped memory for _lambda_.1']
    %13 = vsyncpa [#allocation4], 0
    %14 = vsyncpa [#allocation6], 0
    %15 = vsyncpa [#allocation9], 0
    // Predicated region
    $region2: #{_lambda_.1} parent=1 // pred_check
      _
    $region3: #{_lambda_.1} parent=1 // pred_check_branch
      %17 = sbr.rel (0) target = $region5
    $region4: #{_lambda_.1} parent=1 // pred_region
      _
    $region5: #{_lambda_.1} parent=1 // pred_fallthru
      _
    // Predicated region
    $region6: #{_lambda_.1} parent=1 // pred_check
      _
    $region7: #{_lambda_.1} parent=1 // pred_check_branch
      %19 = sbr.rel (0) target = $region9
    $region8: #{_lambda_.1} parent=1 // pred_region
      %s21 = ssub.s32 1024, 1024
      %22 = vsyncadd [#allocation4], %s21
      %s23 = sshll.u32 [#allocation3], 4
      %s24 = int_to_ptr.vmem [resolvable:$true] %s23
      %29 = dma.hbm_to_vmem [thread:$0]  %s1, 1024, %s24, [#allocation4], 64, 64, 4
    $region9: #{_lambda_.1} parent=1 // pred_fallthru
      _
    // Predicated region
    $region10: #{_lambda_.1} parent=1 // pred_check
      _
    $region11: #{_lambda_.1} parent=1 // pred_check_branch
      %31 = sbr.rel (0) target = $region13
    $region12: #{_lambda_.1} parent=1 // pred_region
      %s33 = ssub.s32 2048, 2048
      %34 = vsyncadd [#allocation6], %s33
      %s35 = sshll.u32 [#allocation5], 4
      %s36 = int_to_ptr.vmem [resolvable:$true] %s35
      %41 = dma.hbm_to_vmem [thread:$0]  %s2, 2048, %s36, [#allocation6], 128, 128, 8
    $region13: #{_lambda_.1} parent=1 // pred_fallthru
      _
    // Predicated region
    $region14: #{_lambda_.1} parent=1 // pred_check
      _
    $region15: #{_lambda_.1} parent=1 // pred_check_branch
      %43 = sbr.rel (0) target = $region17
    $region16: #{_lambda_.1} parent=1 // pred_region
      _
    $region17: #{_lambda_.1} parent=1 // pred_fallthru
      _
    // Predicated region
    $region18: #{_lambda_.1} parent=1 // pred_check
      _
    $region19: #{_lambda_.1} parent=1 // pred_check_branch
      %45 = sbr.rel (0) target = $region21
    $region20: #{_lambda_.1} parent=1 // pred_region
      %s47 = ssub.s32 2048, 2048
      %48 = vsyncadd [#allocation6], %s47
      %s49 = sshll.u32 [#allocation7], 4
      %s50 = int_to_ptr.vmem [resolvable:$true] %s49
      %55 = dma.hbm_to_vmem [thread:$0]  %s4, 2048, %s50, [#allocation6], 128, 128, 8
    $region21: #{_lambda_.1} parent=1 // pred_fallthru
      _
    // Predicated region
    $region22: #{_lambda_.1} parent=1 // pred_check
      _
    $region23: #{_lambda_.1} parent=1 // pred_check_branch
      %57 = sbr.rel (0) target = $region25
    $region24: #{_lambda_.1} parent=1 // pred_region
      %s59 = ssub.s32 2048, 2048
      %60 = vsyncadd [#allocation9], %s59
      %s61 = sshll.u32 [#allocation8], 4
      %s62 = int_to_ptr.vmem [resolvable:$true] %s61
      %67 = dma.hbm_to_vmem [thread:$0]  %s5, 2048, %s62, [#allocation9], 128, 128, 8
    $region25: #{_lambda_.1} parent=1 // pred_fallthru
      _
    // Predicated region
    $region26: #{_lambda_.1} parent=1 // pred_check
      _
    $region27: #{_lambda_.1} parent=1 // pred_check_branch
      %69 = sbr.rel (0) target = $region29
    $region28: #{_lambda_.1} parent=1 // pred_region
      _
    $region29: #{_lambda_.1} parent=1 // pred_fallthru
      _
    // Predicated region
    $region30: #{_lambda_.1} parent=1 // pred_check
      _
    $region31: #{_lambda_.1} parent=1 // pred_check_branch
      %71 = sbr.rel (0) target = $region33
    $region32: #{_lambda_.1} parent=1 // pred_region
      %72 = dma.done [#allocation4], 1024
    $region33: #{_lambda_.1} parent=1 // pred_fallthru
      _
    // Predicated region
    $region34: #{_lambda_.1} parent=1 // pred_check
      _
    $region35: #{_lambda_.1} parent=1 // pred_check_branch
      %74 = sbr.rel (0) target = $region37
    $region36: #{_lambda_.1} parent=1 // pred_region
      %75 = dma.done [#allocation6], 2048
    $region37: #{_lambda_.1} parent=1 // pred_fallthru
      _
    // Predicated region
    $region38: #{_lambda_.1} parent=1 // pred_check
      _
    $region39: #{_lambda_.1} parent=1 // pred_check_branch
      %77 = sbr.rel (0) target = $region41
    $region40: #{_lambda_.1} parent=1 // pred_region
      %78 = dma.done [#allocation6], 2048
    $region41: #{_lambda_.1} parent=1 // pred_fallthru
      _
    // Predicated region
    $region42: #{_lambda_.1} parent=1 // pred_check
      _
    $region43: #{_lambda_.1} parent=1 // pred_check_branch
      %80 = sbr.rel (0) target = $region45
    $region44: #{_lambda_.1} parent=1 // pred_region
      %81 = dma.done [#allocation9], 2048
    $region45: #{_lambda_.1} parent=1 // pred_fallthru
      _
    %v83 = vld [vmem:[#allocation3] sm:$0xf]
    %v84 = vld [vmem:[#allocation3 + $0x4] sm:$0xf]
    %v85 = vld [vmem:[#allocation3 + $0x8] sm:$0xf]
    %v86 = vld [vmem:[#allocation3 + $0xc] sm:$0xf]
    %v87 = vld [vmem:[#allocation3 + $0x10] sm:$0xf]
    %v88 = vld [vmem:[#allocation3 + $0x14] sm:$0xf]
    %v89 = vld [vmem:[#allocation3 + $0x18] sm:$0xf]
    %v90 = vld [vmem:[#allocation3 + $0x1c] sm:$0xf]
    %v91 = vld [vmem:[#allocation3 + $0x20] sm:$0xf]
    %v92 = vld [vmem:[#allocation3 + $0x24] sm:$0xf]
    %v93 = vld [vmem:[#allocation3 + $0x28] sm:$0xf]
    %v94 = vld [vmem:[#allocation3 + $0x2c] sm:$0xf]
    %v95 = vld [vmem:[#allocation3 + $0x30] sm:$0xf]
    %v96 = vld [vmem:[#allocation3 + $0x34] sm:$0xf]
    %v97 = vld [vmem:[#allocation3 + $0x38] sm:$0xf]
    %v98 = vld [vmem:[#allocation3 + $0x3c] sm:$0xf]
    %v99 = vld [vmem:[%s0] sm:$0xf]
    %v100 = vld [vmem:[%s0 + $0x4] sm:$0xf]
    %v101 = vld [vmem:[%s0 + $0x8] sm:$0xf]
    %v102 = vld [vmem:[%s0 + $0xc] sm:$0xf]
    %v103 = vld [vmem:[#allocation5] sm:$0xff]
    %v104 = vld [vmem:[#allocation5 + $0x8] sm:$0xff]
    %v105 = vld [vmem:[#allocation5 + $0x10] sm:$0xff]
    %v106 = vld [vmem:[#allocation5 + $0x18] sm:$0xff]
    %v107 = vld [vmem:[#allocation5 + $0x20] sm:$0xff]
    %v108 = vld [vmem:[#allocation5 + $0x28] sm:$0xff]
    %v109 = vld [vmem:[#allocation5 + $0x30] sm:$0xff]
    %v110 = vld [vmem:[#allocation5 + $0x38] sm:$0xff]
    %v111 = vld [vmem:[#allocation5 + $0x40] sm:$0xff]
    %v112 = vld [vmem:[#allocation5 + $0x48] sm:$0xff]
    %v113 = vld [vmem:[#allocation5 + $0x50] sm:$0xff]
    %v114 = vld [vmem:[#allocation5 + $0x58] sm:$0xff]
    %v115 = vld [vmem:[#allocation5 + $0x60] sm:$0xff]
    %v116 = vld [vmem:[#allocation5 + $0x68] sm:$0xff]
    %v117 = vld [vmem:[#allocation5 + $0x70] sm:$0xff]
    %v118 = vld [vmem:[#allocation5 + $0x78] sm:$0xff]
    %120 = vset.pattern.permute.xlu0 0
    %121 = vperm.xlu0 %120, %v103
    %v122 = vpop.permute.xlu0 %121
    %125 = vset.pattern.permute.xlu0 0
    %126 = vperm.xlu0 %125, %v104
    %v127 = vpop.permute.xlu0 %126
    %130 = vset.pattern.permute.xlu0 0
    %131 = vperm.xlu0 %130, %v105
    %v132 = vpop.permute.xlu0 %131
    %135 = vset.pattern.permute.xlu0 0
    %136 = vperm.xlu0 %135, %v106
    %v137 = vpop.permute.xlu0 %136
    %140 = vset.pattern.permute.xlu0 0
    %141 = vperm.xlu0 %140, %v107
    %v142 = vpop.permute.xlu0 %141
    %145 = vset.pattern.permute.xlu0 0
    %146 = vperm.xlu0 %145, %v108
    %v147 = vpop.permute.xlu0 %146
    %150 = vset.pattern.permute.xlu0 0
    %151 = vperm.xlu0 %150, %v109
    %v152 = vpop.permute.xlu0 %151
    %155 = vset.pattern.permute.xlu0 0
    %156 = vperm.xlu0 %155, %v110
    %v157 = vpop.permute.xlu0 %156
    %160 = vset.pattern.permute.xlu0 0
    %161 = vperm.xlu0 %160, %v111
    %v162 = vpop.permute.xlu0 %161
    %165 = vset.pattern.permute.xlu0 0
    %166 = vperm.xlu0 %165, %v112
    %v167 = vpop.permute.xlu0 %166
    %170 = vset.pattern.permute.xlu0 0
    %171 = vperm.xlu0 %170, %v113
    %v172 = vpop.permute.xlu0 %171
    %175 = vset.pattern.permute.xlu0 0
    %176 = vperm.xlu0 %175, %v114
    %v177 = vpop.permute.xlu0 %176
    %180 = vset.pattern.permute.xlu0 0
    %181 = vperm.xlu0 %180, %v115
    %v182 = vpop.permute.xlu0 %181
    %185 = vset.pattern.permute.xlu0 0
    %186 = vperm.xlu0 %185, %v116
    %v187 = vpop.permute.xlu0 %186
    %190 = vset.pattern.permute.xlu0 0
    %191 = vperm.xlu0 %190, %v117
    %v192 = vpop.permute.xlu0 %191
    %195 = vset.pattern.permute.xlu0 0
    %196 = vperm.xlu0 %195, %v118
    %v197 = vpop.permute.xlu0 %196
    %v215 = vunpack.c.l.b16 %v83
    %v216 = vunpack.c.l.b16 %v84
    %v217 = vunpack.c.l.b16 %v85
    %v218 = vunpack.c.l.b16 %v86
    %v219 = vunpack.c.l.b16 %v87
    %v220 = vunpack.c.l.b16 %v88
    %v221 = vunpack.c.l.b16 %v89
    %v222 = vunpack.c.l.b16 %v90
    %v223 = vunpack.c.l.b16 %v91
    %v224 = vunpack.c.l.b16 %v92
    %v225 = vunpack.c.l.b16 %v93
    %v226 = vunpack.c.l.b16 %v94
    %v227 = vunpack.c.l.b16 %v95
    %v228 = vunpack.c.l.b16 %v96
    %v229 = vunpack.c.l.b16 %v97
    %v230 = vunpack.c.l.b16 %v98
    %v231 = vpack.c.b16 %v216, %v215
    %v232 = vpack.c.b16 %v218, %v217
    %v233 = vpack.c.b16 %v220, %v219
    %v234 = vpack.c.b16 %v222, %v221
    %v235 = vpack.c.b16 %v224, %v223
    %v236 = vpack.c.b16 %v226, %v225
    %v237 = vpack.c.b16 %v228, %v227
    %v238 = vpack.c.b16 %v230, %v229
    %v243 = vunpack.c.l.b16 %v99
    %v244 = vunpack.c.l.b16 %v100
    %v245 = vunpack.c.l.b16 %v101
    %v246 = vunpack.c.l.b16 %v102
    %v247 = vpack.c.b16 %v244, %v243
    %v248 = vpack.c.b16 %v246, %v245
    %vm251 = vcmask 261120
    %v253 = vsel %vm251, %v231, 0
    %v256 = vsel %vm251, %v232, 0
    %v259 = vsel %vm251, %v233, 0
    %v262 = vsel %vm251, %v234, 0
    %v265 = vsel %vm251, %v235, 0
    %v268 = vsel %vm251, %v236, 0
    %v271 = vsel %vm251, %v237, 0
    %v274 = vsel %vm251, %v238, 0
    %276 = vmatprep.subr.bf16.mxu0 0
    %277 = vmatpush1.bf16.msra.mxu0 %v247
    %278 = vmatprep.subr.bf16.mxu0 0
    %279 = vmatpush1.bf16.msra.mxu0 %v248
    %280 = vmatprep.subr.bf16.mxu0 0
    %281 = vmatpush1.bf16.msra.mxu0 0
    %282 = vmatprep.subr.bf16.mxu0 0
    %283 = vmatpush1.bf16.msra.mxu0 0
    %284 = vmatprep.subr.bf16.mxu0 0
    %285 = vmatpush1.bf16.msra.mxu0 0
    %286 = vmatprep.subr.bf16.mxu0 0
    %287 = vmatpush1.bf16.msra.mxu0 0
    %288 = vmatprep.subr.bf16.mxu0 0
    %289 = vmatpush1.bf16.msra.mxu0 0
    %290 = vmatprep.subr.bf16.mxu0 0
    %291 = vmatpush1.bf16.msra.mxu0 0
    %292 = vmatprep.subr.bf16.mxu0 0
    %293 = vmatpush1.bf16.msra.mxu0 0
    %294 = vmatprep.subr.bf16.mxu0 0
    %295 = vmatpush1.bf16.msra.mxu0 0
    %296 = vmatprep.subr.bf16.mxu0 0
    %297 = vmatpush1.bf16.msra.mxu0 0
    %298 = vmatprep.subr.bf16.mxu0 0
    %299 = vmatpush1.bf16.msra.mxu0 0
    %300 = vmatprep.subr.bf16.mxu0 0
    %301 = vmatpush1.bf16.msra.mxu0 0
    %302 = vmatprep.subr.bf16.mxu0 0
    %303 = vmatpush1.bf16.msra.mxu0 0
    %304 = vmatprep.subr.bf16.mxu0 0
    %305 = vmatpush1.bf16.msra.mxu0 0
    %306 = vmatprep.subr.bf16.mxu0 0
    %307 = vmatpush1.bf16.msra.mxu0 0
    %308 = vmatprep.mubr.bf16.mxu0 0
    %309 = vmatmul.mubr.bf16.gmra.mrb[0].mxu0 %v253
    %v310 = vpop.f32.mrb[0].mxu0
    %v311 = vadd.f32 %v122, %v310
    %v312 = vpop.f32.mrb[0].mxu0
    %v313 = vpop.f32.mrb[0].mxu0
    %v314 = vadd.f32 %v127, %v313
    %v315 = vpop.f32.mrb[0].mxu0
    %316 = vmatprep.mubr.bf16.mxu0 0
    %317 = vmatmul.mubr.bf16.gmra.mrb[0].mxu0 %v256
    %v318 = vpop.f32.mrb[0].mxu0
    %v319 = vadd.f32 %v132, %v318
    %v320 = vpop.f32.mrb[0].mxu0
    %v321 = vpop.f32.mrb[0].mxu0
    %v322 = vadd.f32 %v137, %v321
    %v323 = vpop.f32.mrb[0].mxu0
    %324 = vmatprep.mubr.bf16.mxu0 0
    %325 = vmatmul.mubr.bf16.gmra.mrb[0].mxu0 %v259
    %v326 = vpop.f32.mrb[0].mxu0
    %v327 = vadd.f32 %v142, %v326
    %v328 = vpop.f32.mrb[0].mxu0
    %v329 = vpop.f32.mrb[0].mxu0
    %v330 = vadd.f32 %v147, %v329
    %v331 = vpop.f32.mrb[0].mxu0
    %332 = vmatprep.mubr.bf16.mxu0 0
    %333 = vmatmul.mubr.bf16.gmra.mrb[0].mxu0 %v262
    %v334 = vpop.f32.mrb[0].mxu0
    %v335 = vadd.f32 %v152, %v334
    %v336 = vpop.f32.mrb[0].mxu0
    %v337 = vpop.f32.mrb[0].mxu0
    %v338 = vadd.f32 %v157, %v337
    %v339 = vpop.f32.mrb[0].mxu0
    %340 = vmatprep.mubr.bf16.mxu0 0
    %341 = vmatmul.mubr.bf16.gmra.mrb[0].mxu0 %v265
    %v342 = vpop.f32.mrb[0].mxu0
    %v343 = vadd.f32 %v162, %v342
    %v344 = vpop.f32.mrb[0].mxu0
    %v345 = vpop.f32.mrb[0].mxu0
    %v346 = vadd.f32 %v167, %v345
    %v347 = vpop.f32.mrb[0].mxu0
    %348 = vmatprep.mubr.bf16.mxu0 0
    %349 = vmatmul.mubr.bf16.gmra.mrb[0].mxu0 %v268
    %v350 = vpop.f32.mrb[0].mxu0
    %v351 = vadd.f32 %v172, %v350
    %v352 = vpop.f32.mrb[0].mxu0
    %v353 = vpop.f32.mrb[0].mxu0
    %v354 = vadd.f32 %v177, %v353
    %v355 = vpop.f32.mrb[0].mxu0
    %356 = vmatprep.mubr.bf16.mxu0 0
    %357 = vmatmul.mubr.bf16.gmra.mrb[0].mxu0 %v271
    %v358 = vpop.f32.mrb[0].mxu0
    %v359 = vadd.f32 %v182, %v358
    %v360 = vpop.f32.mrb[0].mxu0
    %v361 = vpop.f32.mrb[0].mxu0
    %v362 = vadd.f32 %v187, %v361
    %v363 = vpop.f32.mrb[0].mxu0
    %364 = vmatprep.mubr.bf16.mxu0 0
    %365 = vmatmul.mubr.bf16.gmra.mrb[0].mxu0 %v274
    %v366 = vpop.f32.mrb[0].mxu0
    %v367 = vadd.f32 %v192, %v366
    %v368 = vpop.f32.mrb[0].mxu0
    %v369 = vpop.f32.mrb[0].mxu0
    %v370 = vadd.f32 %v197, %v369
    %v371 = vpop.f32.mrb[0].mxu0
    %372 = vdwg.mxu0
    %v373 = vmax.f32 %v311, 0.0
    %v374 = vmax.f32 %v314, 0.0
    %v375 = vmax.f32 %v319, 0.0
    %v376 = vmax.f32 %v322, 0.0
    %v377 = vmax.f32 %v327, 0.0
    %v378 = vmax.f32 %v330, 0.0
    %v379 = vmax.f32 %v335, 0.0
    %v380 = vmax.f32 %v338, 0.0
    %v381 = vmax.f32 %v343, 0.0
    %v382 = vmax.f32 %v346, 0.0
    %v383 = vmax.f32 %v351, 0.0
    %v384 = vmax.f32 %v354, 0.0
    %v385 = vmax.f32 %v359, 0.0
    %v386 = vmax.f32 %v362, 0.0
    %v387 = vmax.f32 %v367, 0.0
    %v388 = vmax.f32 %v370, 0.0
    %v389 = vld [vmem:[%s3] sm:$0xf]
    %v390 = vld [vmem:[%s3 + $0x4] sm:$0xf]
    %v391 = vld [vmem:[%s3 + $0x8] sm:$0xf]
    %v392 = vld [vmem:[%s3 + $0xc] sm:$0xf]
    %v393 = vld [vmem:[%s3 + $0x10] sm:$0xf]
    %v394 = vld [vmem:[%s3 + $0x14] sm:$0xf]
    %v395 = vld [vmem:[%s3 + $0x18] sm:$0xf]
    %v396 = vld [vmem:[%s3 + $0x1c] sm:$0xf]
    %v397 = vld [vmem:[%s3 + $0x20] sm:$0xf]
    %v398 = vld [vmem:[%s3 + $0x24] sm:$0xf]
    %v399 = vld [vmem:[%s3 + $0x28] sm:$0xf]
    %v400 = vld [vmem:[%s3 + $0x2c] sm:$0xf]
    %v401 = vld [vmem:[%s3 + $0x30] sm:$0xf]
    %v402 = vld [vmem:[%s3 + $0x34] sm:$0xf]
    %v403 = vld [vmem:[%s3 + $0x38] sm:$0xf]
    %v404 = vld [vmem:[%s3 + $0x3c] sm:$0xf]
    %v405 = vpack.c.bf16 %v374, %v373
    %v406 = vpack.c.bf16 %v376, %v375
    %v407 = vpack.c.bf16 %v378, %v377
    %v408 = vpack.c.bf16 %v380, %v379
    %v409 = vpack.c.bf16 %v382, %v381
    %v410 = vpack.c.bf16 %v384, %v383
    %v411 = vpack.c.bf16 %v386, %v385
    %v412 = vpack.c.bf16 %v388, %v387
    %v413 = vld [vmem:[#allocation7] sm:$0xff]
    %v414 = vld [vmem:[#allocation7 + $0x8] sm:$0xff]
    %v415 = vld [vmem:[#allocation7 + $0x10] sm:$0xff]
    %v416 = vld [vmem:[#allocation7 + $0x18] sm:$0xff]
    %v417 = vld [vmem:[#allocation7 + $0x20] sm:$0xff]
    %v418 = vld [vmem:[#allocation7 + $0x28] sm:$0xff]
    %v419 = vld [vmem:[#allocation7 + $0x30] sm:$0xff]
    %v420 = vld [vmem:[#allocation7 + $0x38] sm:$0xff]
    %v421 = vld [vmem:[#allocation7 + $0x40] sm:$0xff]
    %v422 = vld [vmem:[#allocation7 + $0x48] sm:$0xff]
    %v423 = vld [vmem:[#allocation7 + $0x50] sm:$0xff]
    %v424 = vld [vmem:[#allocation7 + $0x58] sm:$0xff]
    %v425 = vld [vmem:[#allocation7 + $0x60] sm:$0xff]
    %v426 = vld [vmem:[#allocation7 + $0x68] sm:$0xff]
    %v427 = vld [vmem:[#allocation7 + $0x70] sm:$0xff]
    %v428 = vld [vmem:[#allocation7 + $0x78] sm:$0xff]
    %430 = vset.pattern.permute.xlu0 0
    %431 = vperm.xlu0 %430, %v413
    %v432 = vpop.permute.xlu0 %431
    %435 = vset.pattern.permute.xlu0 0
    %436 = vperm.xlu0 %435, %v414
    %v437 = vpop.permute.xlu0 %436
    %440 = vset.pattern.permute.xlu0 0
    %441 = vperm.xlu0 %440, %v415
    %v442 = vpop.permute.xlu0 %441
    %445 = vset.pattern.permute.xlu0 0
    %446 = vperm.xlu0 %445, %v416
    %v447 = vpop.permute.xlu0 %446
    %450 = vset.pattern.permute.xlu0 0
    %451 = vperm.xlu0 %450, %v417
    %v452 = vpop.permute.xlu0 %451
    %455 = vset.pattern.permute.xlu0 0
    %456 = vperm.xlu0 %455, %v418
    %v457 = vpop.permute.xlu0 %456
    %460 = vset.pattern.permute.xlu0 0
    %461 = vperm.xlu0 %460, %v419
    %v462 = vpop.permute.xlu0 %461
    %465 = vset.pattern.permute.xlu0 0
    %466 = vperm.xlu0 %465, %v420
    %v467 = vpop.permute.xlu0 %466
    %470 = vset.pattern.permute.xlu0 0
    %471 = vperm.xlu0 %470, %v421
    %v472 = vpop.permute.xlu0 %471
    %475 = vset.pattern.permute.xlu0 0
    %476 = vperm.xlu0 %475, %v422
    %v477 = vpop.permute.xlu0 %476
    %480 = vset.pattern.permute.xlu0 0
    %481 = vperm.xlu0 %480, %v423
    %v482 = vpop.permute.xlu0 %481
    %485 = vset.pattern.permute.xlu0 0
    %486 = vperm.xlu0 %485, %v424
    %v487 = vpop.permute.xlu0 %486
    %490 = vset.pattern.permute.xlu0 0
    %491 = vperm.xlu0 %490, %v425
    %v492 = vpop.permute.xlu0 %491
    %495 = vset.pattern.permute.xlu0 0
    %496 = vperm.xlu0 %495, %v426
    %v497 = vpop.permute.xlu0 %496
    %500 = vset.pattern.permute.xlu0 0
    %501 = vperm.xlu0 %500, %v427
    %v502 = vpop.permute.xlu0 %501
    %505 = vset.pattern.permute.xlu0 0
    %506 = vperm.xlu0 %505, %v428
    %v507 = vpop.permute.xlu0 %506
    %v525 = vunpack.c.l.b16 %v389
    %v526 = vunpack.c.l.b16 %v390
    %v527 = vunpack.c.l.b16 %v391
    %v528 = vunpack.c.l.b16 %v392
    %v529 = vunpack.c.l.b16 %v393
    %v530 = vunpack.c.l.b16 %v394
    %v531 = vunpack.c.l.b16 %v395
    %v532 = vunpack.c.l.b16 %v396
    %v533 = vunpack.c.l.b16 %v397
    %v534 = vunpack.c.l.b16 %v398
    %v535 = vunpack.c.l.b16 %v399
    %v536 = vunpack.c.l.b16 %v400
    %v537 = vunpack.c.l.b16 %v401
    %v538 = vunpack.c.l.b16 %v402
    %v539 = vunpack.c.l.b16 %v403
    %v540 = vunpack.c.l.b16 %v404
    %v541 = vpack.c.b16 %v526, %v525
    %v542 = vpack.c.b16 %v528, %v527
    %v543 = vpack.c.b16 %v530, %v529
    %v544 = vpack.c.b16 %v532, %v531
    %v545 = vpack.c.b16 %v534, %v533
    %v546 = vpack.c.b16 %v536, %v535
    %v547 = vpack.c.b16 %v538, %v537
    %v548 = vpack.c.b16 %v540, %v539
    %557 = vmatprep.subr.bf16.mxu0 0
    %558 = vmatpush1.bf16.msra.mxu0 %v405
    %559 = vmatprep.subr.bf16.mxu0 0
    %560 = vmatpush1.bf16.msra.mxu0 %v406
    %561 = vmatprep.subr.bf16.mxu0 0
    %562 = vmatpush1.bf16.msra.mxu0 %v407
    %563 = vmatprep.subr.bf16.mxu0 0
    %564 = vmatpush1.bf16.msra.mxu0 %v408
    %565 = vmatprep.subr.bf16.mxu0 0
    %566 = vmatpush1.bf16.msra.mxu0 %v409
    %567 = vmatprep.subr.bf16.mxu0 0
    %568 = vmatpush1.bf16.msra.mxu0 %v410
    %569 = vmatprep.subr.bf16.mxu0 0
    %570 = vmatpush1.bf16.msra.mxu0 %v411
    %571 = vmatprep.subr.bf16.mxu0 0
    %572 = vmatpush1.bf16.msra.mxu0 %v412
    %573 = vmatprep.subr.bf16.mxu0 0
    %574 = vmatpush1.bf16.msra.mxu0 0
    %575 = vmatprep.subr.bf16.mxu0 0
    %576 = vmatpush1.bf16.msra.mxu0 0
    %577 = vmatprep.subr.bf16.mxu0 0
    %578 = vmatpush1.bf16.msra.mxu0 0
    %579 = vmatprep.subr.bf16.mxu0 0
    %580 = vmatpush1.bf16.msra.mxu0 0
    %581 = vmatprep.subr.bf16.mxu0 0
    %582 = vmatpush1.bf16.msra.mxu0 0
    %583 = vmatprep.subr.bf16.mxu0 0
    %584 = vmatpush1.bf16.msra.mxu0 0
    %585 = vmatprep.subr.bf16.mxu0 0
    %586 = vmatpush1.bf16.msra.mxu0 0
    %587 = vmatprep.subr.bf16.mxu0 0
    %588 = vmatpush1.bf16.msra.mxu0 0
    %589 = vmatprep.mubr.bf16.mxu0 0
    %590 = vmatmul.mubr.bf16.gmra.mrb[0].mxu0 %v541
    %v591 = vpop.f32.mrb[0].mxu0
    %v592 = vadd.f32 %v432, %v591
    %v593 = vpop.f32.mrb[0].mxu0
    %v594 = vpop.f32.mrb[0].mxu0
    %v595 = vadd.f32 %v437, %v594
    %v596 = vpop.f32.mrb[0].mxu0
    %597 = vmatprep.mubr.bf16.mxu0 0
    %598 = vmatmul.mubr.bf16.gmra.mrb[0].mxu0 %v542
    %v599 = vpop.f32.mrb[0].mxu0
    %v600 = vadd.f32 %v442, %v599
    %v601 = vpop.f32.mrb[0].mxu0
    %v602 = vpop.f32.mrb[0].mxu0
    %v603 = vadd.f32 %v447, %v602
    %v604 = vpop.f32.mrb[0].mxu0
    %605 = vmatprep.mubr.bf16.mxu0 0
    %606 = vmatmul.mubr.bf16.gmra.mrb[0].mxu0 %v543
    %v607 = vpop.f32.mrb[0].mxu0
    %v608 = vadd.f32 %v452, %v607
    %v609 = vpop.f32.mrb[0].mxu0
    %v610 = vpop.f32.mrb[0].mxu0
    %v611 = vadd.f32 %v457, %v610
    %v612 = vpop.f32.mrb[0].mxu0
    %613 = vmatprep.mubr.bf16.mxu0 0
    %614 = vmatmul.mubr.bf16.gmra.mrb[0].mxu0 %v544
    %v615 = vpop.f32.mrb[0].mxu0
    %v616 = vadd.f32 %v462, %v615
    %v617 = vpop.f32.mrb[0].mxu0
    %v618 = vpop.f32.mrb[0].mxu0
    %v619 = vadd.f32 %v467, %v618
    %v620 = vpop.f32.mrb[0].mxu0
    %621 = vmatprep.mubr.bf16.mxu0 0
    %622 = vmatmul.mubr.bf16.gmra.mrb[0].mxu0 %v545
    %v623 = vpop.f32.mrb[0].mxu0
    %v624 = vadd.f32 %v472, %v623
    %v625 = vpop.f32.mrb[0].mxu0
    %v626 = vpop.f32.mrb[0].mxu0
    %v627 = vadd.f32 %v477, %v626
    %v628 = vpop.f32.mrb[0].mxu0
    %629 = vmatprep.mubr.bf16.mxu0 0
    %630 = vmatmul.mubr.bf16.gmra.mrb[0].mxu0 %v546
    %v631 = vpop.f32.mrb[0].mxu0
    %v632 = vadd.f32 %v482, %v631
    %v633 = vpop.f32.mrb[0].mxu0
    %v634 = vpop.f32.mrb[0].mxu0
    %v635 = vadd.f32 %v487, %v634
    %v636 = vpop.f32.mrb[0].mxu0
    %637 = vmatprep.mubr.bf16.mxu0 0
    %638 = vmatmul.mubr.bf16.gmra.mrb[0].mxu0 %v547
    %v639 = vpop.f32.mrb[0].mxu0
    %v640 = vadd.f32 %v492, %v639
    %v641 = vpop.f32.mrb[0].mxu0
    %v642 = vpop.f32.mrb[0].mxu0
    %v643 = vadd.f32 %v497, %v642
    %v644 = vpop.f32.mrb[0].mxu0
    %645 = vmatprep.mubr.bf16.mxu0 0
    %646 = vmatmul.mubr.bf16.gmra.mrb[0].mxu0 %v548
    %v647 = vpop.f32.mrb[0].mxu0
    %v648 = vadd.f32 %v502, %v647
    %v649 = vpop.f32.mrb[0].mxu0
    %v650 = vpop.f32.mrb[0].mxu0
    %v651 = vadd.f32 %v507, %v650
    %v652 = vpop.f32.mrb[0].mxu0
    %653 = vdwg.mxu0
    %v654 = vmax.f32 %v592, 0.0
    %v655 = vmax.f32 %v595, 0.0
    %v656 = vmax.f32 %v600, 0.0
    %v657 = vmax.f32 %v603, 0.0
    %v658 = vmax.f32 %v608, 0.0
    %v659 = vmax.f32 %v611, 0.0
    %v660 = vmax.f32 %v616, 0.0
    %v661 = vmax.f32 %v619, 0.0
    %v662 = vmax.f32 %v624, 0.0
    %v663 = vmax.f32 %v627, 0.0
    %v664 = vmax.f32 %v632, 0.0
    %v665 = vmax.f32 %v635, 0.0
    %v666 = vmax.f32 %v640, 0.0
    %v667 = vmax.f32 %v643, 0.0
    %v668 = vmax.f32 %v648, 0.0
    %v669 = vmax.f32 %v651, 0.0
    %v670 = vld [vmem:[#allocation8] sm:$0xff]
    %v671 = vld [vmem:[#allocation8 + $0x8] sm:$0xff]
    %v672 = vld [vmem:[#allocation8 + $0x10] sm:$0xff]
    %v673 = vld [vmem:[#allocation8 + $0x18] sm:$0xff]
    %v674 = vld [vmem:[#allocation8 + $0x20] sm:$0xff]
    %v675 = vld [vmem:[#allocation8 + $0x28] sm:$0xff]
    %v676 = vld [vmem:[#allocation8 + $0x30] sm:$0xff]
    %v677 = vld [vmem:[#allocation8 + $0x38] sm:$0xff]
    %v678 = vld [vmem:[#allocation8 + $0x40] sm:$0xff]
    %v679 = vld [vmem:[#allocation8 + $0x48] sm:$0xff]
    %v680 = vld [vmem:[#allocation8 + $0x50] sm:$0xff]
    %v681 = vld [vmem:[#allocation8 + $0x58] sm:$0xff]
    %v682 = vld [vmem:[#allocation8 + $0x60] sm:$0xff]
    %v683 = vld [vmem:[#allocation8 + $0x68] sm:$0xff]
    %v684 = vld [vmem:[#allocation8 + $0x70] sm:$0xff]
    %v685 = vld [vmem:[#allocation8 + $0x78] sm:$0xff]
    %687 = vset.pattern.permute.xlu0 0
    %688 = vperm.xlu0 %687, %v670
    %v689 = vpop.permute.xlu0 %688
    %692 = vset.pattern.permute.xlu0 0
    %693 = vperm.xlu0 %692, %v671
    %v694 = vpop.permute.xlu0 %693
    %697 = vset.pattern.permute.xlu0 0
    %698 = vperm.xlu0 %697, %v672
    %v699 = vpop.permute.xlu0 %698
    %702 = vset.pattern.permute.xlu0 0
    %703 = vperm.xlu0 %702, %v673
    %v704 = vpop.permute.xlu0 %703
    %707 = vset.pattern.permute.xlu0 0
    %708 = vperm.xlu0 %707, %v674
    %v709 = vpop.permute.xlu0 %708
    %712 = vset.pattern.permute.xlu0 0
    %713 = vperm.xlu0 %712, %v675
    %v714 = vpop.permute.xlu0 %713
    %717 = vset.pattern.permute.xlu0 0
    %718 = vperm.xlu0 %717, %v676
    %v719 = vpop.permute.xlu0 %718
    %722 = vset.pattern.permute.xlu0 0
    %723 = vperm.xlu0 %722, %v677
    %v724 = vpop.permute.xlu0 %723
    %727 = vset.pattern.permute.xlu0 0
    %728 = vperm.xlu0 %727, %v678
    %v729 = vpop.permute.xlu0 %728
    %732 = vset.pattern.permute.xlu0 0
    %733 = vperm.xlu0 %732, %v679
    %v734 = vpop.permute.xlu0 %733
    %737 = vset.pattern.permute.xlu0 0
    %738 = vperm.xlu0 %737, %v680
    %v739 = vpop.permute.xlu0 %738
    %742 = vset.pattern.permute.xlu0 0
    %743 = vperm.xlu0 %742, %v681
    %v744 = vpop.permute.xlu0 %743
    %747 = vset.pattern.permute.xlu0 0
    %748 = vperm.xlu0 %747, %v682
    %v749 = vpop.permute.xlu0 %748
    %752 = vset.pattern.permute.xlu0 0
    %753 = vperm.xlu0 %752, %v683
    %v754 = vpop.permute.xlu0 %753
    %757 = vset.pattern.permute.xlu0 0
    %758 = vperm.xlu0 %757, %v684
    %v759 = vpop.permute.xlu0 %758
    %762 = vset.pattern.permute.xlu0 0
    %763 = vperm.xlu0 %762, %v685
    %v764 = vpop.permute.xlu0 %763
    %v766 = vmul.f32 %v654, %v689
    %v767 = vmul.f32 %v655, %v694
    %v768 = vmul.f32 %v656, %v699
    %v769 = vmul.f32 %v657, %v704
    %v770 = vmul.f32 %v658, %v709
    %v771 = vmul.f32 %v659, %v714
    %v772 = vmul.f32 %v660, %v719
    %v773 = vmul.f32 %v661, %v724
    %v774 = vmul.f32 %v662, %v729
    %v775 = vmul.f32 %v663, %v734
    %v776 = vmul.f32 %v664, %v739
    %v777 = vmul.f32 %v665, %v744
    %v778 = vmul.f32 %v666, %v749
    %v779 = vmul.f32 %v667, %v754
    %v780 = vmul.f32 %v668, %v759
    %v781 = vmul.f32 %v669, %v764
    %v782 = vadd.f32 %v766, %v767
    %v783 = vadd.f32 %v782, %v768
    %v784 = vadd.f32 %v783, %v769
    %v785 = vadd.f32 %v784, %v770
    %v786 = vadd.f32 %v785, %v771
    %v787 = vadd.f32 %v786, %v772
    %v788 = vadd.f32 %v787, %v773
    %v789 = vadd.f32 %v788, %v774
    %v790 = vadd.f32 %v789, %v775
    %v791 = vadd.f32 %v790, %v776
    %v792 = vadd.f32 %v791, %v777
    %v793 = vadd.f32 %v792, %v778
    %v794 = vadd.f32 %v793, %v779
    %v795 = vadd.f32 %v794, %v780
    %v796 = vadd.f32 %v795, %v781
    %v797 = vrot.slane %v796, 4
    %v798 = vadd.f32 %v796, %v797
    %v799 = vrot.slane %v798, 2
    %v800 = vadd.f32 %v798, %v799
    %v801 = vrot.slane %v800, 1
    %v802 = vadd.f32 %v800, %v801
    %s803 = sld [smem:[#allocation2]]
    %v804 = vstv %s803
    %v805 = vadd.f32 %v802, %v804
    %806 = vst [vmem:[%s7] sm:$0x1] %v805
    // Predicated region
    $region46: #{_lambda_.1} parent=1 // pred_check
      _
    $region47: #{_lambda_.1} parent=1 // pred_check_branch
      %808 = sbr.rel (0) target = $region49
    $region48: #{_lambda_.1} parent=1 // pred_region
      _
    $region49: #{_lambda_.1} parent=1 // pred_fallthru
      _
    // Predicated region
    $region50: #{_lambda_.1} parent=1 // pred_check
      _
    $region51: #{_lambda_.1} parent=1 // pred_check_branch
      %810 = sbr.rel (0) target = $region53
    $region52: #{_lambda_.1} parent=1 // pred_region
      _
    $region53: #{_lambda_.1} parent=1 // pred_fallthru
      _
    %811 = vsyncpa [#allocation4], 1
    %812 = vsyncpa [#allocation6], 1
    %813 = vsyncpa [#allocation9], 1

</llo_original>
